<compile_context>
chip_gen: v7x
topology: tpu7x:2x2x1
jax: 0.10.0
libtpu: 0.0.40
codegen_flags: <defaults>
</compile_context>

<pallas_src>
import jax
import jax.numpy as jnp
from jax.experimental import pallas as pl
from jax.experimental.pallas import tpu as pltpu

BETA = 0.95
THRESHOLD = 1.0


def _leaky_step(cur, mem):
    # Single-select form: saves a compare-cast and a multiply per vreg per step.
    # Strict '>' (tie at threshold does not spike), matching snntorch.
    mem_new = BETA * mem + cur - jnp.where(mem > THRESHOLD, THRESHOLD, 0.0)
    spk = jnp.where(mem_new > THRESHOLD, 1.0, 0.0)
    return spk, mem_new


def snn_fc_kernel(x_ref, w1_ref, b1_ref, w2_ref, b2_ref, spk_ref, mem_ref, spk1_scr):
    num_steps, tile_b, num_outputs = spk_ref.shape

    # ---- loop-invariant work ---------------------------------------------------
    # fc1 does not depend on t: compute it once (bf16 operands, f32 accumulation).
    cur1 = jnp.dot(x_ref[...], w1_ref[...],
                   preferred_element_type=jnp.float32) + b1_ref[...]   # (tile_b, H_pad) f32

    # ---- layer-1 leaky recurrence (VPU only), fully unrolled --------------------
    # Stack spk1 for all steps into VMEM scratch so fc2 becomes ONE big matmul.
    mem1 = jnp.zeros(cur1.shape, jnp.float32)
    for t in range(num_steps):
        spk1, mem1 = _leaky_step(cur1, mem1)
        spk1_scr[pl.ds(t * tile_b, tile_b), :] = spk1        # aligned sublane store

    # ---- single batched fc2 over all time steps ---------------------------------
    # spk1 is exactly 0/1, so the (single) bf16 cast is lossless.
    spk1_all = spk1_scr[...].astype(jnp.bfloat16)            # (num_steps*tile_b, H_pad)
    cur2_all = jnp.dot(spk1_all, w2_ref[...],
                       preferred_element_type=jnp.float32) + b2_ref[...]

    # ---- layer-2 leaky recurrence + stores, fully unrolled -----------------------
    mem2 = jnp.zeros((tile_b, num_outputs), jnp.float32)
    for t in range(num_steps):
        cur2 = cur2_all[t * tile_b:(t + 1) * tile_b, :]
        spk2, mem2 = _leaky_step(cur2, mem2)
        spk_ref[t] = spk2.astype(jnp.bfloat16)               # 0/1 -> lossless bf16
        mem_ref[t] = mem2                                    # keep membrane in f32


def snn_fc_net(x, w1, b1, w2, b2, *, num_steps=10, tile_b=None):
    B, num_inputs = x.shape
    num_hidden = w1.shape[1]
    num_outputs = w2.shape[1]

    # Batch-tile heuristic: tiles are independent (recurrence is only over time), so
    # prefer >=2 tiles (v7x has 2 TensorCores), >=16 rows per tile, <=256 rows per tile.
    if tile_b is None:
        tile_b = B
        for cand in (256, 128, 64, 32, 16):
            if B % cand == 0 and B // cand >= 2:
                tile_b = cand
                break
    assert B % tile_b == 0, "B must be divisible by tile_b"

    # Pad the hidden dim to a full 128-lane multiple: W1 columns / b1 / W2 rows.
    # Padded neurons get cur1 = 0, never spike, and contribute 0 to fc2 -> exact.
    h_pad = pl.cdiv(num_hidden, 128) * 128
    w1_p = jnp.zeros((num_inputs, h_pad), jnp.bfloat16)
    w1_p = w1_p.at[:, :num_hidden].set(w1.astype(jnp.bfloat16))
    b1_p = jnp.zeros((1, h_pad), jnp.float32)
    b1_p = b1_p.at[:, :num_hidden].set(b1.reshape(1, num_hidden).astype(jnp.float32))
    w2_p = jnp.zeros((h_pad, num_outputs), jnp.bfloat16)
    w2_p = w2_p.at[:num_hidden, :].set(w2.astype(jnp.bfloat16))
    b2_2d = b2.reshape(1, num_outputs).astype(jnp.float32)

    x_bf16 = x.astype(jnp.bfloat16)

    grid_spec = pltpu.PrefetchScalarGridSpec(
        num_scalar_prefetch=0,
        grid=(B // tile_b,),
        in_specs=[
            pl.BlockSpec((tile_b, num_inputs), lambda i: (i, 0)),
            pl.BlockSpec((num_inputs, h_pad), lambda i: (0, 0)),
            pl.BlockSpec((1, h_pad), lambda i: (0, 0)),
            pl.BlockSpec((h_pad, num_outputs), lambda i: (0, 0)),
            pl.BlockSpec((1, num_outputs), lambda i: (0, 0)),
        ],
        out_specs=[
            pl.BlockSpec((num_steps, tile_b, num_outputs), lambda i: (0, i, 0)),
            pl.BlockSpec((num_steps, tile_b, num_outputs), lambda i: (0, i, 0)),
        ],
        scratch_shapes=[
            pltpu.VMEM((num_steps * tile_b, h_pad), jnp.float32),   # stacked spk1
        ],
    )

    spk_rec, mem_rec = pl.pallas_call(
        snn_fc_kernel,
        out_shape=(
            jax.ShapeDtypeStruct((num_steps, B, num_outputs), jnp.bfloat16),
            jax.ShapeDtypeStruct((num_steps, B, num_outputs), jnp.float32),
        ),
        grid_spec=grid_spec,
        compiler_params=pltpu.CompilerParams(
            dimension_semantics=("parallel",),  # batch tiles are independent
        ),
    )(x_bf16, w1_p, b1_p, w2_p, b2_2d)

    # spk_rec is bf16 (exactly 0/1 -> lossless); cast outside if f32 is required.
    return spk_rec, mem_rec


def snn_fc_net_ref(x, w1, b1, w2, b2, *, num_steps=10):
    """Pure-JAX reference mirroring the PyTorch forward (same bf16-operand /
    f32-accumulation matmul numerics as the kernel)."""
    x_b = x.astype(jnp.bfloat16)
    w1_b = w1.astype(jnp.bfloat16)
    w2_b = w2.astype(jnp.bfloat16)
    B = x.shape[0]
    mem1 = jnp.zeros((B, w1.shape[1]), jnp.float32)
    mem2 = jnp.zeros((B, w2.shape[1]), jnp.float32)
    spks, mems = [], []
    for _ in range(num_steps):
        cur1 = jnp.dot(x_b, w1_b, preferred_element_type=jnp.float32) + b1
        spk1, mem1 = _leaky_step(cur1, mem1)
        cur2 = jnp.dot(spk1.astype(jnp.bfloat16), w2_b,
                       preferred_element_type=jnp.float32) + b2
        spk2, mem2 = _leaky_step(cur2, mem2)
        spks.append(spk2)
        mems.append(mem2)
    return jnp.stack(spks, 0), jnp.stack(mems, 0)


def init_params(key, num_inputs, num_hidden, num_outputs):
    """Deterministic init matching torch.nn.Linear (uniform +/- 1/sqrt(fan_in))."""
    k1, k2, k3, k4 = jax.random.split(key, 4)
    lim1 = 1.0 / jnp.sqrt(num_inputs)
    lim2 = 1.0 / jnp.sqrt(num_hidden)
    w1 = jax.random.uniform(k1, (num_inputs, num_hidden), jnp.float32, -lim1, lim1)
    b1 = jax.random.uniform(k2, (num_hidden,), jnp.float32, -lim1, lim1)
    w2 = jax.random.uniform(k3, (num_hidden, num_outputs), jnp.float32, -lim2, lim2)
    b2 = jax.random.uniform(k4, (num_outputs,), jnp.float32, -lim2, lim2)
    return w1, b1, w2, b2


if __name__ == "__main__":
    B, NUM_INPUTS, NUM_HIDDEN, NUM_OUTPUTS, NUM_STEPS = 8, 128, 64, 16, 10

    key = jax.random.PRNGKey(0)
    kx, kp = jax.random.split(key)
    # Scale inputs up a bit so spikes actually fire.
    x = 2.0 * jax.random.normal(kx, (B, NUM_INPUTS), jnp.float32)
    w1, b1, w2, b2 = init_params(kp, NUM_INPUTS, NUM_HIDDEN, NUM_OUTPUTS)

    spk_rec, mem_rec = snn_fc_net(x, w1, b1, w2, b2, num_steps=NUM_STEPS)
    spk_rec = jax.block_until_ready(spk_rec)
    mem_rec = jax.block_until_ready(mem_rec)

    spk_ref, mem_ref = snn_fc_net_ref(x, w1, b1, w2, b2, num_steps=NUM_STEPS)
    assert spk_rec.shape == (NUM_STEPS, B, NUM_OUTPUTS)
    assert mem_rec.shape == (NUM_STEPS, B, NUM_OUTPUTS)
    assert jnp.allclose(spk_rec.astype(jnp.float32), spk_ref, atol=1e-5)
    assert jnp.allclose(mem_rec, mem_ref, atol=1e-3)

    print("KERNEL_OK")
</pallas_src>

<mosaic_0001>
module attributes {stable_mosaic.version = 11 : i64} {
  func.func @snn_fc_kernel(%arg0: i32, %arg1: memref<8x128xbf16, #tpu.memory_space<vmem>>, %arg2: memref<128x128xbf16, #tpu.memory_space<vmem>>, %arg3: memref<1x128xf32, #tpu.memory_space<vmem>>, %arg4: memref<128x16xbf16, #tpu.memory_space<vmem>>, %arg5: memref<1x16xf32, #tpu.memory_space<vmem>>, %arg6: memref<10x8x16xbf16, #tpu.memory_space<vmem>>, %arg7: memref<10x8x16xf32, #tpu.memory_space<vmem>>, %arg8: memref<80x128xf32, #tpu.memory_space<vmem>>) attributes {dimension_semantics = [#tpu.dimension_semantics<parallel>], iteration_bounds = array<i64: 1>, scalar_prefetch = 0 : i64, scratch_operands = 1 : i64, tpu.core_type = #tpu.core_type<tc>, window_params = [{transform_indices = @transform_0, window_bounds = array<i64: 8, 128>}, {pipeline_mode = #tpu.pipeline_mode<synchronous>, transform_indices = @transform_1, window_bounds = array<i64: 128, 128>}, {pipeline_mode = #tpu.pipeline_mode<synchronous>, transform_indices = @transform_2, window_bounds = array<i64: 1, 128>}, {pipeline_mode = #tpu.pipeline_mode<synchronous>, transform_indices = @transform_3, window_bounds = array<i64: 128, 16>}, {pipeline_mode = #tpu.pipeline_mode<synchronous>, transform_indices = @transform_4, window_bounds = array<i64: 1, 16>}, {transform_indices = @transform_5, window_bounds = array<i64: 10, 8, 16>}, {transform_indices = @transform_6, window_bounds = array<i64: 10, 8, 16>}]} {
    %c0 = arith.constant 0 : index
    %c0_0 = arith.constant 0 : index
    %0 = vector.load %arg1[%c0, %c0_0] : memref<8x128xbf16, #tpu.memory_space<vmem>>, vector<8x128xbf16>
    %c0_1 = arith.constant 0 : index
    %c0_2 = arith.constant 0 : index
    %1 = vector.load %arg2[%c0_1, %c0_2] : memref<128x128xbf16, #tpu.memory_space<vmem>>, vector<128x128xbf16>
    %cst = arith.constant dense<0.000000e+00> : vector<8x128xf32>
    %2 = tpu.matmul %0, %1, %cst {dimension_numbers = #tpu.dot_dimension_numbers<[1], [0], [0], [1], [0, 0, 1, 1], [], []>} : vector<8x128xbf16>, vector<128x128xbf16>, vector<8x128xf32> -> vector<8x128xf32>
    %c0_3 = arith.constant 0 : index
    %c0_4 = arith.constant 0 : index
    %3 = vector.load %arg3[%c0_3, %c0_4] : memref<1x128xf32, #tpu.memory_space<vmem>>, vector<1x128xf32>
    %4 = vector.broadcast %3 : vector<1x128xf32> to vector<8x128xf32>
    %5 = arith.addf %2, %4 : vector<8x128xf32>
    %cst_5 = arith.constant 0.000000e+00 : f32
    %6 = vector.broadcast %cst_5 : f32 to vector<8x128xf32>
    %cst_6 = arith.constant 0.949999988 : f32
    %7 = vector.broadcast %cst_6 : f32 to vector<8x128xf32>
    %8 = arith.mulf %7, %6 : vector<8x128xf32>
    %9 = arith.addf %8, %5 : vector<8x128xf32>
    %cst_7 = arith.constant 1.000000e+00 : f32
    %10 = vector.broadcast %cst_7 : f32 to vector<8x128xf32>
    %11 = arith.cmpf ogt, %6, %10 : vector<8x128xf32>
    %cst_8 = arith.constant 1.000000e+00 : f32
    %cst_9 = arith.constant 0.000000e+00 : f32
    %12 = vector.broadcast %cst_8 : f32 to vector<8x128xf32>
    %13 = vector.broadcast %cst_9 : f32 to vector<8x128xf32>
    %14 = arith.select %11, %12, %13 : vector<8x128xi1>, vector<8x128xf32>
    %15 = arith.subf %9, %14 : vector<8x128xf32>
    %cst_10 = arith.constant 1.000000e+00 : f32
    %16 = vector.broadcast %cst_10 : f32 to vector<8x128xf32>
    %17 = arith.cmpf ogt, %15, %16 : vector<8x128xf32>
    %cst_11 = arith.constant 1.000000e+00 : f32
    %cst_12 = arith.constant 0.000000e+00 : f32
    %18 = vector.broadcast %cst_11 : f32 to vector<8x128xf32>
    %19 = vector.broadcast %cst_12 : f32 to vector<8x128xf32>
    %20 = arith.select %17, %18, %19 : vector<8x128xi1>, vector<8x128xf32>
    %c0_13 = arith.constant 0 : index
    %c0_14 = arith.constant 0 : index
    %21 = vector.load %arg8[%c0_13, %c0_14] : memref<80x128xf32, #tpu.memory_space<vmem>>, vector<8x128xf32>
    tpu.vector_store %arg8[%c0_13, %c0_14], %20 {strides = array<i32>} : memref<80x128xf32, #tpu.memory_space<vmem>>, vector<8x128xf32>,
    %cst_15 = arith.constant 0.949999988 : f32
    %22 = vector.broadcast %cst_15 : f32 to vector<8x128xf32>
    %23 = arith.mulf %22, %15 : vector<8x128xf32>
    %24 = arith.addf %23, %5 : vector<8x128xf32>
    %cst_16 = arith.constant 1.000000e+00 : f32
    %25 = vector.broadcast %cst_16 : f32 to vector<8x128xf32>
    %26 = arith.cmpf ogt, %15, %25 : vector<8x128xf32>
    %cst_17 = arith.constant 1.000000e+00 : f32
    %cst_18 = arith.constant 0.000000e+00 : f32
    %27 = vector.broadcast %cst_17 : f32 to vector<8x128xf32>
    %28 = vector.broadcast %cst_18 : f32 to vector<8x128xf32>
    %29 = arith.select %26, %27, %28 : vector<8x128xi1>, vector<8x128xf32>
    %30 = arith.subf %24, %29 : vector<8x128xf32>
    %cst_19 = arith.constant 1.000000e+00 : f32
    %31 = vector.broadcast %cst_19 : f32 to vector<8x128xf32>
    %32 = arith.cmpf ogt, %30, %31 : vector<8x128xf32>
    %cst_20 = arith.constant 1.000000e+00 : f32
    %cst_21 = arith.constant 0.000000e+00 : f32
    %33 = vector.broadcast %cst_20 : f32 to vector<8x128xf32>
    %34 = vector.broadcast %cst_21 : f32 to vector<8x128xf32>
    %35 = arith.select %32, %33, %34 : vector<8x128xi1>, vector<8x128xf32>
    %c8 = arith.constant 8 : index
    %c0_22 = arith.constant 0 : index
    %36 = vector.load %arg8[%c8, %c0_22] : memref<80x128xf32, #tpu.memory_space<vmem>>, vector<8x128xf32>
    tpu.vector_store %arg8[%c8, %c0_22], %35 {strides = array<i32>} : memref<80x128xf32, #tpu.memory_space<vmem>>, vector<8x128xf32>,
    %cst_23 = arith.constant 0.949999988 : f32
    %37 = vector.broadcast %cst_23 : f32 to vector<8x128xf32>
    %38 = arith.mulf %37, %30 : vector<8x128xf32>
    %39 = arith.addf %38, %5 : vector<8x128xf32>
    %cst_24 = arith.constant 1.000000e+00 : f32
    %40 = vector.broadcast %cst_24 : f32 to vector<8x128xf32>
    %41 = arith.cmpf ogt, %30, %40 : vector<8x128xf32>
    %cst_25 = arith.constant 1.000000e+00 : f32
    %cst_26 = arith.constant 0.000000e+00 : f32
    %42 = vector.broadcast %cst_25 : f32 to vector<8x128xf32>
    %43 = vector.broadcast %cst_26 : f32 to vector<8x128xf32>
    %44 = arith.select %41, %42, %43 : vector<8x128xi1>, vector<8x128xf32>
    %45 = arith.subf %39, %44 : vector<8x128xf32>
    %cst_27 = arith.constant 1.000000e+00 : f32
    %46 = vector.broadcast %cst_27 : f32 to vector<8x128xf32>
    %47 = arith.cmpf ogt, %45, %46 : vector<8x128xf32>
    %cst_28 = arith.constant 1.000000e+00 : f32
    %cst_29 = arith.constant 0.000000e+00 : f32
    %48 = vector.broadcast %cst_28 : f32 to vector<8x128xf32>
    %49 = vector.broadcast %cst_29 : f32 to vector<8x128xf32>
    %50 = arith.select %47, %48, %49 : vector<8x128xi1>, vector<8x128xf32>
    %c16 = arith.constant 16 : index
    %c0_30 = arith.constant 0 : index
    %51 = vector.load %arg8[%c16, %c0_30] : memref<80x128xf32, #tpu.memory_space<vmem>>, vector<8x128xf32>
    tpu.vector_store %arg8[%c16, %c0_30], %50 {strides = array<i32>} : memref<80x128xf32, #tpu.memory_space<vmem>>, vector<8x128xf32>,
    %cst_31 = arith.constant 0.949999988 : f32
    %52 = vector.broadcast %cst_31 : f32 to vector<8x128xf32>
    %53 = arith.mulf %52, %45 : vector<8x128xf32>
    %54 = arith.addf %53, %5 : vector<8x128xf32>
    %cst_32 = arith.constant 1.000000e+00 : f32
    %55 = vector.broadcast %cst_32 : f32 to vector<8x128xf32>
    %56 = arith.cmpf ogt, %45, %55 : vector<8x128xf32>
    %cst_33 = arith.constant 1.000000e+00 : f32
    %cst_34 = arith.constant 0.000000e+00 : f32
    %57 = vector.broadcast %cst_33 : f32 to vector<8x128xf32>
    %58 = vector.broadcast %cst_34 : f32 to vector<8x128xf32>
    %59 = arith.select %56, %57, %58 : vector<8x128xi1>, vector<8x128xf32>
    %60 = arith.subf %54, %59 : vector<8x128xf32>
    %cst_35 = arith.constant 1.000000e+00 : f32
    %61 = vector.broadcast %cst_35 : f32 to vector<8x128xf32>
    %62 = arith.cmpf ogt, %60, %61 : vector<8x128xf32>
    %cst_36 = arith.constant 1.000000e+00 : f32
    %cst_37 = arith.constant 0.000000e+00 : f32
    %63 = vector.broadcast %cst_36 : f32 to vector<8x128xf32>
    %64 = vector.broadcast %cst_37 : f32 to vector<8x128xf32>
    %65 = arith.select %62, %63, %64 : vector<8x128xi1>, vector<8x128xf32>
    %c24 = arith.constant 24 : index
    %c0_38 = arith.constant 0 : index
    %66 = vector.load %arg8[%c24, %c0_38] : memref<80x128xf32, #tpu.memory_space<vmem>>, vector<8x128xf32>
    tpu.vector_store %arg8[%c24, %c0_38], %65 {strides = array<i32>} : memref<80x128xf32, #tpu.memory_space<vmem>>, vector<8x128xf32>,
    %cst_39 = arith.constant 0.949999988 : f32
    %67 = vector.broadcast %cst_39 : f32 to vector<8x128xf32>
    %68 = arith.mulf %67, %60 : vector<8x128xf32>
    %69 = arith.addf %68, %5 : vector<8x128xf32>
    %cst_40 = arith.constant 1.000000e+00 : f32
    %70 = vector.broadcast %cst_40 : f32 to vector<8x128xf32>
    %71 = arith.cmpf ogt, %60, %70 : vector<8x128xf32>
    %cst_41 = arith.constant 1.000000e+00 : f32
    %cst_42 = arith.constant 0.000000e+00 : f32
    %72 = vector.broadcast %cst_41 : f32 to vector<8x128xf32>
    %73 = vector.broadcast %cst_42 : f32 to vector<8x128xf32>
    %74 = arith.select %71, %72, %73 : vector<8x128xi1>, vector<8x128xf32>
    %75 = arith.subf %69, %74 : vector<8x128xf32>
    %cst_43 = arith.constant 1.000000e+00 : f32
    %76 = vector.broadcast %cst_43 : f32 to vector<8x128xf32>
    %77 = arith.cmpf ogt, %75, %76 : vector<8x128xf32>
    %cst_44 = arith.constant 1.000000e+00 : f32
    %cst_45 = arith.constant 0.000000e+00 : f32
    %78 = vector.broadcast %cst_44 : f32 to vector<8x128xf32>
    %79 = vector.broadcast %cst_45 : f32 to vector<8x128xf32>
    %80 = arith.select %77, %78, %79 : vector<8x128xi1>, vector<8x128xf32>
    %c32 = arith.constant 32 : index
    %c0_46 = arith.constant 0 : index
    %81 = vector.load %arg8[%c32, %c0_46] : memref<80x128xf32, #tpu.memory_space<vmem>>, vector<8x128xf32>
    tpu.vector_store %arg8[%c32, %c0_46], %80 {strides = array<i32>} : memref<80x128xf32, #tpu.memory_space<vmem>>, vector<8x128xf32>,
    %cst_47 = arith.constant 0.949999988 : f32
    %82 = vector.broadcast %cst_47 : f32 to vector<8x128xf32>
    %83 = arith.mulf %82, %75 : vector<8x128xf32>
    %84 = arith.addf %83, %5 : vector<8x128xf32>
    %cst_48 = arith.constant 1.000000e+00 : f32
    %85 = vector.broadcast %cst_48 : f32 to vector<8x128xf32>
    %86 = arith.cmpf ogt, %75, %85 : vector<8x128xf32>
    %cst_49 = arith.constant 1.000000e+00 : f32
    %cst_50 = arith.constant 0.000000e+00 : f32
    %87 = vector.broadcast %cst_49 : f32 to vector<8x128xf32>
    %88 = vector.broadcast %cst_50 : f32 to vector<8x128xf32>
    %89 = arith.select %86, %87, %88 : vector<8x128xi1>, vector<8x128xf32>
    %90 = arith.subf %84, %89 : vector<8x128xf32>
    %cst_51 = arith.constant 1.000000e+00 : f32
    %91 = vector.broadcast %cst_51 : f32 to vector<8x128xf32>
    %92 = arith.cmpf ogt, %90, %91 : vector<8x128xf32>
    %cst_52 = arith.constant 1.000000e+00 : f32
    %cst_53 = arith.constant 0.000000e+00 : f32
    %93 = vector.broadcast %cst_52 : f32 to vector<8x128xf32>
    %94 = vector.broadcast %cst_53 : f32 to vector<8x128xf32>
    %95 = arith.select %92, %93, %94 : vector<8x128xi1>, vector<8x128xf32>
    %c40 = arith.constant 40 : index
    %c0_54 = arith.constant 0 : index
    %96 = vector.load %arg8[%c40, %c0_54] : memref<80x128xf32, #tpu.memory_space<vmem>>, vector<8x128xf32>
    tpu.vector_store %arg8[%c40, %c0_54], %95 {strides = array<i32>} : memref<80x128xf32, #tpu.memory_space<vmem>>, vector<8x128xf32>,
    %cst_55 = arith.constant 0.949999988 : f32
    %97 = vector.broadcast %cst_55 : f32 to vector<8x128xf32>
    %98 = arith.mulf %97, %90 : vector<8x128xf32>
    %99 = arith.addf %98, %5 : vector<8x128xf32>
    %cst_56 = arith.constant 1.000000e+00 : f32
    %100 = vector.broadcast %cst_56 : f32 to vector<8x128xf32>
    %101 = arith.cmpf ogt, %90, %100 : vector<8x128xf32>
    %cst_57 = arith.constant 1.000000e+00 : f32
    %cst_58 = arith.constant 0.000000e+00 : f32
    %102 = vector.broadcast %cst_57 : f32 to vector<8x128xf32>
    %103 = vector.broadcast %cst_58 : f32 to vector<8x128xf32>
    %104 = arith.select %101, %102, %103 : vector<8x128xi1>, vector<8x128xf32>
    %105 = arith.subf %99, %104 : vector<8x128xf32>
    %cst_59 = arith.constant 1.000000e+00 : f32
    %106 = vector.broadcast %cst_59 : f32 to vector<8x128xf32>
    %107 = arith.cmpf ogt, %105, %106 : vector<8x128xf32>
    %cst_60 = arith.constant 1.000000e+00 : f32
    %cst_61 = arith.constant 0.000000e+00 : f32
    %108 = vector.broadcast %cst_60 : f32 to vector<8x128xf32>
    %109 = vector.broadcast %cst_61 : f32 to vector<8x128xf32>
    %110 = arith.select %107, %108, %109 : vector<8x128xi1>, vector<8x128xf32>
    %c48 = arith.constant 48 : index
    %c0_62 = arith.constant 0 : index
    %111 = vector.load %arg8[%c48, %c0_62] : memref<80x128xf32, #tpu.memory_space<vmem>>, vector<8x128xf32>
    tpu.vector_store %arg8[%c48, %c0_62], %110 {strides = array<i32>} : memref<80x128xf32, #tpu.memory_space<vmem>>, vector<8x128xf32>,
    %cst_63 = arith.constant 0.949999988 : f32
    %112 = vector.broadcast %cst_63 : f32 to vector<8x128xf32>
    %113 = arith.mulf %112, %105 : vector<8x128xf32>
    %114 = arith.addf %113, %5 : vector<8x128xf32>
    %cst_64 = arith.constant 1.000000e+00 : f32
    %115 = vector.broadcast %cst_64 : f32 to vector<8x128xf32>
    %116 = arith.cmpf ogt, %105, %115 : vector<8x128xf32>
    %cst_65 = arith.constant 1.000000e+00 : f32
    %cst_66 = arith.constant 0.000000e+00 : f32
    %117 = vector.broadcast %cst_65 : f32 to vector<8x128xf32>
    %118 = vector.broadcast %cst_66 : f32 to vector<8x128xf32>
    %119 = arith.select %116, %117, %118 : vector<8x128xi1>, vector<8x128xf32>
    %120 = arith.subf %114, %119 : vector<8x128xf32>
    %cst_67 = arith.constant 1.000000e+00 : f32
    %121 = vector.broadcast %cst_67 : f32 to vector<8x128xf32>
    %122 = arith.cmpf ogt, %120, %121 : vector<8x128xf32>
    %cst_68 = arith.constant 1.000000e+00 : f32
    %cst_69 = arith.constant 0.000000e+00 : f32
    %123 = vector.broadcast %cst_68 : f32 to vector<8x128xf32>
    %124 = vector.broadcast %cst_69 : f32 to vector<8x128xf32>
    %125 = arith.select %122, %123, %124 : vector<8x128xi1>, vector<8x128xf32>
    %c56 = arith.constant 56 : index
    %c0_70 = arith.constant 0 : index
    %126 = vector.load %arg8[%c56, %c0_70] : memref<80x128xf32, #tpu.memory_space<vmem>>, vector<8x128xf32>
    tpu.vector_store %arg8[%c56, %c0_70], %125 {strides = array<i32>} : memref<80x128xf32, #tpu.memory_space<vmem>>, vector<8x128xf32>,
    %cst_71 = arith.constant 0.949999988 : f32
    %127 = vector.broadcast %cst_71 : f32 to vector<8x128xf32>
    %128 = arith.mulf %127, %120 : vector<8x128xf32>
    %129 = arith.addf %128, %5 : vector<8x128xf32>
    %cst_72 = arith.constant 1.000000e+00 : f32
    %130 = vector.broadcast %cst_72 : f32 to vector<8x128xf32>
    %131 = arith.cmpf ogt, %120, %130 : vector<8x128xf32>
    %cst_73 = arith.constant 1.000000e+00 : f32
    %cst_74 = arith.constant 0.000000e+00 : f32
    %132 = vector.broadcast %cst_73 : f32 to vector<8x128xf32>
    %133 = vector.broadcast %cst_74 : f32 to vector<8x128xf32>
    %134 = arith.select %131, %132, %133 : vector<8x128xi1>, vector<8x128xf32>
    %135 = arith.subf %129, %134 : vector<8x128xf32>
    %cst_75 = arith.constant 1.000000e+00 : f32
    %136 = vector.broadcast %cst_75 : f32 to vector<8x128xf32>
    %137 = arith.cmpf ogt, %135, %136 : vector<8x128xf32>
    %cst_76 = arith.constant 1.000000e+00 : f32
    %cst_77 = arith.constant 0.000000e+00 : f32
    %138 = vector.broadcast %cst_76 : f32 to vector<8x128xf32>
    %139 = vector.broadcast %cst_77 : f32 to vector<8x128xf32>
    %140 = arith.select %137, %138, %139 : vector<8x128xi1>, vector<8x128xf32>
    %c64 = arith.constant 64 : index
    %c0_78 = arith.constant 0 : index
    %141 = vector.load %arg8[%c64, %c0_78] : memref<80x128xf32, #tpu.memory_space<vmem>>, vector<8x128xf32>
    tpu.vector_store %arg8[%c64, %c0_78], %140 {strides = array<i32>} : memref<80x128xf32, #tpu.memory_space<vmem>>, vector<8x128xf32>,
    %cst_79 = arith.constant 0.949999988 : f32
    %142 = vector.broadcast %cst_79 : f32 to vector<8x128xf32>
    %143 = arith.mulf %142, %135 : vector<8x128xf32>
    %144 = arith.addf %143, %5 : vector<8x128xf32>
    %cst_80 = arith.constant 1.000000e+00 : f32
    %145 = vector.broadcast %cst_80 : f32 to vector<8x128xf32>
    %146 = arith.cmpf ogt, %135, %145 : vector<8x128xf32>
    %cst_81 = arith.constant 1.000000e+00 : f32
    %cst_82 = arith.constant 0.000000e+00 : f32
    %147 = vector.broadcast %cst_81 : f32 to vector<8x128xf32>
    %148 = vector.broadcast %cst_82 : f32 to vector<8x128xf32>
    %149 = arith.select %146, %147, %148 : vector<8x128xi1>, vector<8x128xf32>
    %150 = arith.subf %144, %149 : vector<8x128xf32>
    %cst_83 = arith.constant 1.000000e+00 : f32
    %151 = vector.broadcast %cst_83 : f32 to vector<8x128xf32>
    %152 = arith.cmpf ogt, %150, %151 : vector<8x128xf32>
    %cst_84 = arith.constant 1.000000e+00 : f32
    %cst_85 = arith.constant 0.000000e+00 : f32
    %153 = vector.broadcast %cst_84 : f32 to vector<8x128xf32>
    %154 = vector.broadcast %cst_85 : f32 to vector<8x128xf32>
    %155 = arith.select %152, %153, %154 : vector<8x128xi1>, vector<8x128xf32>
    %c72 = arith.constant 72 : index
    %c0_86 = arith.constant 0 : index
    %156 = vector.load %arg8[%c72, %c0_86] : memref<80x128xf32, #tpu.memory_space<vmem>>, vector<8x128xf32>
    tpu.vector_store %arg8[%c72, %c0_86], %155 {strides = array<i32>} : memref<80x128xf32, #tpu.memory_space<vmem>>, vector<8x128xf32>,
    %c0_87 = arith.constant 0 : index
    %c0_88 = arith.constant 0 : index
    %157 = vector.load %arg8[%c0_87, %c0_88] : memref<80x128xf32, #tpu.memory_space<vmem>>, vector<80x128xf32>
    %158 = arith.truncf %157 : vector<80x128xf32> to vector<80x128xbf16>
    %c0_89 = arith.constant 0 : index
    %c0_90 = arith.constant 0 : index
    %159 = vector.load %arg4[%c0_89, %c0_90] : memref<128x16xbf16, #tpu.memory_space<vmem>>, vector<128x16xbf16>
    %cst_91 = arith.constant dense<0.000000e+00> : vector<80x16xf32>
    %160 = tpu.matmul %158, %159, %cst_91 {dimension_numbers = #tpu.dot_dimension_numbers<[1], [0], [0], [1], [0, 0, 1, 1], [], []>} : vector<80x128xbf16>, vector<128x16xbf16>, vector<80x16xf32> -> vector<80x16xf32>
    %c0_92 = arith.constant 0 : index
    %c0_93 = arith.constant 0 : index
    %161 = vector.load %arg5[%c0_92, %c0_93] : memref<1x16xf32, #tpu.memory_space<vmem>>, vector<1x16xf32>
    %162 = vector.broadcast %161 : vector<1x16xf32> to vector<80x16xf32>
    %163 = arith.addf %160, %162 : vector<80x16xf32>
    %cst_94 = arith.constant 0.000000e+00 : f32
    %164 = vector.broadcast %cst_94 : f32 to vector<8x16xf32>
    %165 = vector.extract_strided_slice %163 {offsets = [0, 0], sizes = [8, 16], strides = [1, 1]} : vector<80x16xf32> to vector<8x16xf32>
    %cst_95 = arith.constant 0.949999988 : f32
    %166 = vector.broadcast %cst_95 : f32 to vector<8x16xf32>
    %167 = arith.mulf %166, %164 : vector<8x16xf32>
    %168 = arith.addf %167, %165 : vector<8x16xf32>
    %cst_96 = arith.constant 1.000000e+00 : f32
    %169 = vector.broadcast %cst_96 : f32 to vector<8x16xf32>
    %170 = arith.cmpf ogt, %164, %169 : vector<8x16xf32>
    %cst_97 = arith.constant 1.000000e+00 : f32
    %cst_98 = arith.constant 0.000000e+00 : f32
    %171 = vector.broadcast %cst_97 : f32 to vector<8x16xf32>
    %172 = vector.broadcast %cst_98 : f32 to vector<8x16xf32>
    %173 = arith.select %170, %171, %172 : vector<8x16xi1>, vector<8x16xf32>
    %174 = arith.subf %168, %173 : vector<8x16xf32>
    %cst_99 = arith.constant 1.000000e+00 : f32
    %175 = vector.broadcast %cst_99 : f32 to vector<8x16xf32>
    %176 = arith.cmpf ogt, %174, %175 : vector<8x16xf32>
    %cst_100 = arith.constant 1.000000e+00 : f32
    %cst_101 = arith.constant 0.000000e+00 : f32
    %177 = vector.broadcast %cst_100 : f32 to vector<8x16xf32>
    %178 = vector.broadcast %cst_101 : f32 to vector<8x16xf32>
    %179 = arith.select %176, %177, %178 : vector<8x16xi1>, vector<8x16xf32>
    %180 = arith.truncf %179 : vector<8x16xf32> to vector<8x16xbf16>
    %c0_102 = arith.constant 0 : index
    %c0_103 = arith.constant 0 : index
    %c0_104 = arith.constant 0 : index
    %181 = vector.load %arg6[%c0_102, %c0_103, %c0_104] : memref<10x8x16xbf16, #tpu.memory_space<vmem>>, vector<1x8x16xbf16>
    %182 = vector.shape_cast %181 : vector<1x8x16xbf16> to vector<8x16xbf16>
    %183 = vector.shape_cast %180 : vector<8x16xbf16> to vector<1x8x16xbf16>
    tpu.vector_store %arg6[%c0_102, %c0_103, %c0_104], %183 {strides = array<i32>} : memref<10x8x16xbf16, #tpu.memory_space<vmem>>, vector<1x8x16xbf16>,
    %c0_105 = arith.constant 0 : index
    %c0_106 = arith.constant 0 : index
    %c0_107 = arith.constant 0 : index
    %184 = vector.load %arg7[%c0_105, %c0_106, %c0_107] : memref<10x8x16xf32, #tpu.memory_space<vmem>>, vector<1x8x16xf32>
    %185 = vector.shape_cast %184 : vector<1x8x16xf32> to vector<8x16xf32>
    %186 = vector.shape_cast %174 : vector<8x16xf32> to vector<1x8x16xf32>
    tpu.vector_store %arg7[%c0_105, %c0_106, %c0_107], %186 {strides = array<i32>} : memref<10x8x16xf32, #tpu.memory_space<vmem>>, vector<1x8x16xf32>,
    %187 = vector.extract_strided_slice %163 {offsets = [8, 0], sizes = [8, 16], strides = [1, 1]} : vector<80x16xf32> to vector<8x16xf32>
    %cst_108 = arith.constant 0.949999988 : f32
    %188 = vector.broadcast %cst_108 : f32 to vector<8x16xf32>
    %189 = arith.mulf %188, %174 : vector<8x16xf32>
    %190 = arith.addf %189, %187 : vector<8x16xf32>
    %cst_109 = arith.constant 1.000000e+00 : f32
    %191 = vector.broadcast %cst_109 : f32 to vector<8x16xf32>
    %192 = arith.cmpf ogt, %174, %191 : vector<8x16xf32>
    %cst_110 = arith.constant 1.000000e+00 : f32
    %cst_111 = arith.constant 0.000000e+00 : f32
    %193 = vector.broadcast %cst_110 : f32 to vector<8x16xf32>
    %194 = vector.broadcast %cst_111 : f32 to vector<8x16xf32>
    %195 = arith.select %192, %193, %194 : vector<8x16xi1>, vector<8x16xf32>
    %196 = arith.subf %190, %195 : vector<8x16xf32>
    %cst_112 = arith.constant 1.000000e+00 : f32
    %197 = vector.broadcast %cst_112 : f32 to vector<8x16xf32>
    %198 = arith.cmpf ogt, %196, %197 : vector<8x16xf32>
    %cst_113 = arith.constant 1.000000e+00 : f32
    %cst_114 = arith.constant 0.000000e+00 : f32
    %199 = vector.broadcast %cst_113 : f32 to vector<8x16xf32>
    %200 = vector.broadcast %cst_114 : f32 to vector<8x16xf32>
    %201 = arith.select %198, %199, %200 : vector<8x16xi1>, vector<8x16xf32>
    %202 = arith.truncf %201 : vector<8x16xf32> to vector<8x16xbf16>
    %c1 = arith.constant 1 : index
    %c0_115 = arith.constant 0 : index
    %c0_116 = arith.constant 0 : index
    %203 = vector.load %arg6[%c1, %c0_115, %c0_116] : memref<10x8x16xbf16, #tpu.memory_space<vmem>>, vector<1x8x16xbf16>
    %204 = vector.shape_cast %203 : vector<1x8x16xbf16> to vector<8x16xbf16>
    %205 = vector.shape_cast %202 : vector<8x16xbf16> to vector<1x8x16xbf16>
    tpu.vector_store %arg6[%c1, %c0_115, %c0_116], %205 {strides = array<i32>} : memref<10x8x16xbf16, #tpu.memory_space<vmem>>, vector<1x8x16xbf16>,
    %c1_117 = arith.constant 1 : index
    %c0_118 = arith.constant 0 : index
    %c0_119 = arith.constant 0 : index
    %206 = vector.load %arg7[%c1_117, %c0_118, %c0_119] : memref<10x8x16xf32, #tpu.memory_space<vmem>>, vector<1x8x16xf32>
    %207 = vector.shape_cast %206 : vector<1x8x16xf32> to vector<8x16xf32>
    %208 = vector.shape_cast %196 : vector<8x16xf32> to vector<1x8x16xf32>
    tpu.vector_store %arg7[%c1_117, %c0_118, %c0_119], %208 {strides = array<i32>} : memref<10x8x16xf32, #tpu.memory_space<vmem>>, vector<1x8x16xf32>,
    %209 = vector.extract_strided_slice %163 {offsets = [16, 0], sizes = [8, 16], strides = [1, 1]} : vector<80x16xf32> to vector<8x16xf32>
    %cst_120 = arith.constant 0.949999988 : f32
    %210 = vector.broadcast %cst_120 : f32 to vector<8x16xf32>
    %211 = arith.mulf %210, %196 : vector<8x16xf32>
    %212 = arith.addf %211, %209 : vector<8x16xf32>
    %cst_121 = arith.constant 1.000000e+00 : f32
    %213 = vector.broadcast %cst_121 : f32 to vector<8x16xf32>
    %214 = arith.cmpf ogt, %196, %213 : vector<8x16xf32>
    %cst_122 = arith.constant 1.000000e+00 : f32
    %cst_123 = arith.constant 0.000000e+00 : f32
    %215 = vector.broadcast %cst_122 : f32 to vector<8x16xf32>
    %216 = vector.broadcast %cst_123 : f32 to vector<8x16xf32>
    %217 = arith.select %214, %215, %216 : vector<8x16xi1>, vector<8x16xf32>
    %218 = arith.subf %212, %217 : vector<8x16xf32>
    %cst_124 = arith.constant 1.000000e+00 : f32
    %219 = vector.broadcast %cst_124 : f32 to vector<8x16xf32>
    %220 = arith.cmpf ogt, %218, %219 : vector<8x16xf32>
    %cst_125 = arith.constant 1.000000e+00 : f32
    %cst_126 = arith.constant 0.000000e+00 : f32
    %221 = vector.broadcast %cst_125 : f32 to vector<8x16xf32>
    %222 = vector.broadcast %cst_126 : f32 to vector<8x16xf32>
    %223 = arith.select %220, %221, %222 : vector<8x16xi1>, vector<8x16xf32>
    %224 = arith.truncf %223 : vector<8x16xf32> to vector<8x16xbf16>
    %c2 = arith.constant 2 : index
    %c0_127 = arith.constant 0 : index
    %c0_128 = arith.constant 0 : index
    %225 = vector.load %arg6[%c2, %c0_127, %c0_128] : memref<10x8x16xbf16, #tpu.memory_space<vmem>>, vector<1x8x16xbf16>
    %226 = vector.shape_cast %225 : vector<1x8x16xbf16> to vector<8x16xbf16>
    %227 = vector.shape_cast %224 : vector<8x16xbf16> to vector<1x8x16xbf16>
    tpu.vector_store %arg6[%c2, %c0_127, %c0_128], %227 {strides = array<i32>} : memref<10x8x16xbf16, #tpu.memory_space<vmem>>, vector<1x8x16xbf16>,
    %c2_129 = arith.constant 2 : index
    %c0_130 = arith.constant 0 : index
    %c0_131 = arith.constant 0 : index
    %228 = vector.load %arg7[%c2_129, %c0_130, %c0_131] : memref<10x8x16xf32, #tpu.memory_space<vmem>>, vector<1x8x16xf32>
    %229 = vector.shape_cast %228 : vector<1x8x16xf32> to vector<8x16xf32>
    %230 = vector.shape_cast %218 : vector<8x16xf32> to vector<1x8x16xf32>
    tpu.vector_store %arg7[%c2_129, %c0_130, %c0_131], %230 {strides = array<i32>} : memref<10x8x16xf32, #tpu.memory_space<vmem>>, vector<1x8x16xf32>,
    %231 = vector.extract_strided_slice %163 {offsets = [24, 0], sizes = [8, 16], strides = [1, 1]} : vector<80x16xf32> to vector<8x16xf32>
    %cst_132 = arith.constant 0.949999988 : f32
    %232 = vector.broadcast %cst_132 : f32 to vector<8x16xf32>
    %233 = arith.mulf %232, %218 : vector<8x16xf32>
    %234 = arith.addf %233, %231 : vector<8x16xf32>
    %cst_133 = arith.constant 1.000000e+00 : f32
    %235 = vector.broadcast %cst_133 : f32 to vector<8x16xf32>
    %236 = arith.cmpf ogt, %218, %235 : vector<8x16xf32>
    %cst_134 = arith.constant 1.000000e+00 : f32
    %cst_135 = arith.constant 0.000000e+00 : f32
    %237 = vector.broadcast %cst_134 : f32 to vector<8x16xf32>
    %238 = vector.broadcast %cst_135 : f32 to vector<8x16xf32>
    %239 = arith.select %236, %237, %238 : vector<8x16xi1>, vector<8x16xf32>
    %240 = arith.subf %234, %239 : vector<8x16xf32>
    %cst_136 = arith.constant 1.000000e+00 : f32
    %241 = vector.broadcast %cst_136 : f32 to vector<8x16xf32>
    %242 = arith.cmpf ogt, %240, %241 : vector<8x16xf32>
    %cst_137 = arith.constant 1.000000e+00 : f32
    %cst_138 = arith.constant 0.000000e+00 : f32
    %243 = vector.broadcast %cst_137 : f32 to vector<8x16xf32>
    %244 = vector.broadcast %cst_138 : f32 to vector<8x16xf32>
    %245 = arith.select %242, %243, %244 : vector<8x16xi1>, vector<8x16xf32>
    %246 = arith.truncf %245 : vector<8x16xf32> to vector<8x16xbf16>
    %c3 = arith.constant 3 : index
    %c0_139 = arith.constant 0 : index
    %c0_140 = arith.constant 0 : index
    %247 = vector.load %arg6[%c3, %c0_139, %c0_140] : memref<10x8x16xbf16, #tpu.memory_space<vmem>>, vector<1x8x16xbf16>
    %248 = vector.shape_cast %247 : vector<1x8x16xbf16> to vector<8x16xbf16>
    %249 = vector.shape_cast %246 : vector<8x16xbf16> to vector<1x8x16xbf16>
    tpu.vector_store %arg6[%c3, %c0_139, %c0_140], %249 {strides = array<i32>} : memref<10x8x16xbf16, #tpu.memory_space<vmem>>, vector<1x8x16xbf16>,
    %c3_141 = arith.constant 3 : index
    %c0_142 = arith.constant 0 : index
    %c0_143 = arith.constant 0 : index
    %250 = vector.load %arg7[%c3_141, %c0_142, %c0_143] : memref<10x8x16xf32, #tpu.memory_space<vmem>>, vector<1x8x16xf32>
    %251 = vector.shape_cast %250 : vector<1x8x16xf32> to vector<8x16xf32>
    %252 = vector.shape_cast %240 : vector<8x16xf32> to vector<1x8x16xf32>
    tpu.vector_store %arg7[%c3_141, %c0_142, %c0_143], %252 {strides = array<i32>} : memref<10x8x16xf32, #tpu.memory_space<vmem>>, vector<1x8x16xf32>,
    %253 = vector.extract_strided_slice %163 {offsets = [32, 0], sizes = [8, 16], strides = [1, 1]} : vector<80x16xf32> to vector<8x16xf32>
    %cst_144 = arith.constant 0.949999988 : f32
    %254 = vector.broadcast %cst_144 : f32 to vector<8x16xf32>
    %255 = arith.mulf %254, %240 : vector<8x16xf32>
    %256 = arith.addf %255, %253 : vector<8x16xf32>
    %cst_145 = arith.constant 1.000000e+00 : f32
    %257 = vector.broadcast %cst_145 : f32 to vector<8x16xf32>
    %258 = arith.cmpf ogt, %240, %257 : vector<8x16xf32>
    %cst_146 = arith.constant 1.000000e+00 : f32
    %cst_147 = arith.constant 0.000000e+00 : f32
    %259 = vector.broadcast %cst_146 : f32 to vector<8x16xf32>
    %260 = vector.broadcast %cst_147 : f32 to vector<8x16xf32>
    %261 = arith.select %258, %259, %260 : vector<8x16xi1>, vector<8x16xf32>
    %262 = arith.subf %256, %261 : vector<8x16xf32>
    %cst_148 = arith.constant 1.000000e+00 : f32
    %263 = vector.broadcast %cst_148 : f32 to vector<8x16xf32>
    %264 = arith.cmpf ogt, %262, %263 : vector<8x16xf32>
    %cst_149 = arith.constant 1.000000e+00 : f32
    %cst_150 = arith.constant 0.000000e+00 : f32
    %265 = vector.broadcast %cst_149 : f32 to vector<8x16xf32>
    %266 = vector.broadcast %cst_150 : f32 to vector<8x16xf32>
    %267 = arith.select %264, %265, %266 : vector<8x16xi1>, vector<8x16xf32>
    %268 = arith.truncf %267 : vector<8x16xf32> to vector<8x16xbf16>
    %c4 = arith.constant 4 : index
    %c0_151 = arith.constant 0 : index
    %c0_152 = arith.constant 0 : index
    %269 = vector.load %arg6[%c4, %c0_151, %c0_152] : memref<10x8x16xbf16, #tpu.memory_space<vmem>>, vector<1x8x16xbf16>
    %270 = vector.shape_cast %269 : vector<1x8x16xbf16> to vector<8x16xbf16>
    %271 = vector.shape_cast %268 : vector<8x16xbf16> to vector<1x8x16xbf16>
    tpu.vector_store %arg6[%c4, %c0_151, %c0_152], %271 {strides = array<i32>} : memref<10x8x16xbf16, #tpu.memory_space<vmem>>, vector<1x8x16xbf16>,
    %c4_153 = arith.constant 4 : index
    %c0_154 = arith.constant 0 : index
    %c0_155 = arith.constant 0 : index
    %272 = vector.load %arg7[%c4_153, %c0_154, %c0_155] : memref<10x8x16xf32, #tpu.memory_space<vmem>>, vector<1x8x16xf32>
    %273 = vector.shape_cast %272 : vector<1x8x16xf32> to vector<8x16xf32>
    %274 = vector.shape_cast %262 : vector<8x16xf32> to vector<1x8x16xf32>
    tpu.vector_store %arg7[%c4_153, %c0_154, %c0_155], %274 {strides = array<i32>} : memref<10x8x16xf32, #tpu.memory_space<vmem>>, vector<1x8x16xf32>,
    %275 = vector.extract_strided_slice %163 {offsets = [40, 0], sizes = [8, 16], strides = [1, 1]} : vector<80x16xf32> to vector<8x16xf32>
    %cst_156 = arith.constant 0.949999988 : f32
    %276 = vector.broadcast %cst_156 : f32 to vector<8x16xf32>
    %277 = arith.mulf %276, %262 : vector<8x16xf32>
    %278 = arith.addf %277, %275 : vector<8x16xf32>
    %cst_157 = arith.constant 1.000000e+00 : f32
    %279 = vector.broadcast %cst_157 : f32 to vector<8x16xf32>
    %280 = arith.cmpf ogt, %262, %279 : vector<8x16xf32>
    %cst_158 = arith.constant 1.000000e+00 : f32
    %cst_159 = arith.constant 0.000000e+00 : f32
    %281 = vector.broadcast %cst_158 : f32 to vector<8x16xf32>
    %282 = vector.broadcast %cst_159 : f32 to vector<8x16xf32>
    %283 = arith.select %280, %281, %282 : vector<8x16xi1>, vector<8x16xf32>
    %284 = arith.subf %278, %283 : vector<8x16xf32>
    %cst_160 = arith.constant 1.000000e+00 : f32
    %285 = vector.broadcast %cst_160 : f32 to vector<8x16xf32>
    %286 = arith.cmpf ogt, %284, %285 : vector<8x16xf32>
    %cst_161 = arith.constant 1.000000e+00 : f32
    %cst_162 = arith.constant 0.000000e+00 : f32
    %287 = vector.broadcast %cst_161 : f32 to vector<8x16xf32>
    %288 = vector.broadcast %cst_162 : f32 to vector<8x16xf32>
    %289 = arith.select %286, %287, %288 : vector<8x16xi1>, vector<8x16xf32>
    %290 = arith.truncf %289 : vector<8x16xf32> to vector<8x16xbf16>
    %c5 = arith.constant 5 : index
    %c0_163 = arith.constant 0 : index
    %c0_164 = arith.constant 0 : index
    %291 = vector.load %arg6[%c5, %c0_163, %c0_164] : memref<10x8x16xbf16, #tpu.memory_space<vmem>>, vector<1x8x16xbf16>
    %292 = vector.shape_cast %291 : vector<1x8x16xbf16> to vector<8x16xbf16>
    %293 = vector.shape_cast %290 : vector<8x16xbf16> to vector<1x8x16xbf16>
    tpu.vector_store %arg6[%c5, %c0_163, %c0_164], %293 {strides = array<i32>} : memref<10x8x16xbf16, #tpu.memory_space<vmem>>, vector<1x8x16xbf16>,
    %c5_165 = arith.constant 5 : index
    %c0_166 = arith.constant 0 : index
    %c0_167 = arith.constant 0 : index
    %294 = vector.load %arg7[%c5_165, %c0_166, %c0_167] : memref<10x8x16xf32, #tpu.memory_space<vmem>>, vector<1x8x16xf32>
    %295 = vector.shape_cast %294 : vector<1x8x16xf32> to vector<8x16xf32>
    %296 = vector.shape_cast %284 : vector<8x16xf32> to vector<1x8x16xf32>
    tpu.vector_store %arg7[%c5_165, %c0_166, %c0_167], %296 {strides = array<i32>} : memref<10x8x16xf32, #tpu.memory_space<vmem>>, vector<1x8x16xf32>,
    %297 = vector.extract_strided_slice %163 {offsets = [48, 0], sizes = [8, 16], strides = [1, 1]} : vector<80x16xf32> to vector<8x16xf32>
    %cst_168 = arith.constant 0.949999988 : f32
    %298 = vector.broadcast %cst_168 : f32 to vector<8x16xf32>
    %299 = arith.mulf %298, %284 : vector<8x16xf32>
    %300 = arith.addf %299, %297 : vector<8x16xf32>
    %cst_169 = arith.constant 1.000000e+00 : f32
    %301 = vector.broadcast %cst_169 : f32 to vector<8x16xf32>
    %302 = arith.cmpf ogt, %284, %301 : vector<8x16xf32>
    %cst_170 = arith.constant 1.000000e+00 : f32
    %cst_171 = arith.constant 0.000000e+00 : f32
    %303 = vector.broadcast %cst_170 : f32 to vector<8x16xf32>
    %304 = vector.broadcast %cst_171 : f32 to vector<8x16xf32>
    %305 = arith.select %302, %303, %304 : vector<8x16xi1>, vector<8x16xf32>
    %306 = arith.subf %300, %305 : vector<8x16xf32>
    %cst_172 = arith.constant 1.000000e+00 : f32
    %307 = vector.broadcast %cst_172 : f32 to vector<8x16xf32>
    %308 = arith.cmpf ogt, %306, %307 : vector<8x16xf32>
    %cst_173 = arith.constant 1.000000e+00 : f32
    %cst_174 = arith.constant 0.000000e+00 : f32
    %309 = vector.broadcast %cst_173 : f32 to vector<8x16xf32>
    %310 = vector.broadcast %cst_174 : f32 to vector<8x16xf32>
    %311 = arith.select %308, %309, %310 : vector<8x16xi1>, vector<8x16xf32>
    %312 = arith.truncf %311 : vector<8x16xf32> to vector<8x16xbf16>
    %c6 = arith.constant 6 : index
    %c0_175 = arith.constant 0 : index
    %c0_176 = arith.constant 0 : index
    %313 = vector.load %arg6[%c6, %c0_175, %c0_176] : memref<10x8x16xbf16, #tpu.memory_space<vmem>>, vector<1x8x16xbf16>
    %314 = vector.shape_cast %313 : vector<1x8x16xbf16> to vector<8x16xbf16>
    %315 = vector.shape_cast %312 : vector<8x16xbf16> to vector<1x8x16xbf16>
    tpu.vector_store %arg6[%c6, %c0_175, %c0_176], %315 {strides = array<i32>} : memref<10x8x16xbf16, #tpu.memory_space<vmem>>, vector<1x8x16xbf16>,
    %c6_177 = arith.constant 6 : index
    %c0_178 = arith.constant 0 : index
    %c0_179 = arith.constant 0 : index
    %316 = vector.load %arg7[%c6_177, %c0_178, %c0_179] : memref<10x8x16xf32, #tpu.memory_space<vmem>>, vector<1x8x16xf32>
    %317 = vector.shape_cast %316 : vector<1x8x16xf32> to vector<8x16xf32>
    %318 = vector.shape_cast %306 : vector<8x16xf32> to vector<1x8x16xf32>
    tpu.vector_store %arg7[%c6_177, %c0_178, %c0_179], %318 {strides = array<i32>} : memref<10x8x16xf32, #tpu.memory_space<vmem>>, vector<1x8x16xf32>,
    %319 = vector.extract_strided_slice %163 {offsets = [56, 0], sizes = [8, 16], strides = [1, 1]} : vector<80x16xf32> to vector<8x16xf32>
    %cst_180 = arith.constant 0.949999988 : f32
    %320 = vector.broadcast %cst_180 : f32 to vector<8x16xf32>
    %321 = arith.mulf %320, %306 : vector<8x16xf32>
    %322 = arith.addf %321, %319 : vector<8x16xf32>
    %cst_181 = arith.constant 1.000000e+00 : f32
    %323 = vector.broadcast %cst_181 : f32 to vector<8x16xf32>
    %324 = arith.cmpf ogt, %306, %323 : vector<8x16xf32>
    %cst_182 = arith.constant 1.000000e+00 : f32
    %cst_183 = arith.constant 0.000000e+00 : f32
    %325 = vector.broadcast %cst_182 : f32 to vector<8x16xf32>
    %326 = vector.broadcast %cst_183 : f32 to vector<8x16xf32>
    %327 = arith.select %324, %325, %326 : vector<8x16xi1>, vector<8x16xf32>
    %328 = arith.subf %322, %327 : vector<8x16xf32>
    %cst_184 = arith.constant 1.000000e+00 : f32
    %329 = vector.broadcast %cst_184 : f32 to vector<8x16xf32>
    %330 = arith.cmpf ogt, %328, %329 : vector<8x16xf32>
    %cst_185 = arith.constant 1.000000e+00 : f32
    %cst_186 = arith.constant 0.000000e+00 : f32
    %331 = vector.broadcast %cst_185 : f32 to vector<8x16xf32>
    %332 = vector.broadcast %cst_186 : f32 to vector<8x16xf32>
    %333 = arith.select %330, %331, %332 : vector<8x16xi1>, vector<8x16xf32>
    %334 = arith.truncf %333 : vector<8x16xf32> to vector<8x16xbf16>
    %c7 = arith.constant 7 : index
    %c0_187 = arith.constant 0 : index
    %c0_188 = arith.constant 0 : index
    %335 = vector.load %arg6[%c7, %c0_187, %c0_188] : memref<10x8x16xbf16, #tpu.memory_space<vmem>>, vector<1x8x16xbf16>
    %336 = vector.shape_cast %335 : vector<1x8x16xbf16> to vector<8x16xbf16>
    %337 = vector.shape_cast %334 : vector<8x16xbf16> to vector<1x8x16xbf16>
    tpu.vector_store %arg6[%c7, %c0_187, %c0_188], %337 {strides = array<i32>} : memref<10x8x16xbf16, #tpu.memory_space<vmem>>, vector<1x8x16xbf16>,
    %c7_189 = arith.constant 7 : index
    %c0_190 = arith.constant 0 : index
    %c0_191 = arith.constant 0 : index
    %338 = vector.load %arg7[%c7_189, %c0_190, %c0_191] : memref<10x8x16xf32, #tpu.memory_space<vmem>>, vector<1x8x16xf32>
    %339 = vector.shape_cast %338 : vector<1x8x16xf32> to vector<8x16xf32>
    %340 = vector.shape_cast %328 : vector<8x16xf32> to vector<1x8x16xf32>
    tpu.vector_store %arg7[%c7_189, %c0_190, %c0_191], %340 {strides = array<i32>} : memref<10x8x16xf32, #tpu.memory_space<vmem>>, vector<1x8x16xf32>,
    %341 = vector.extract_strided_slice %163 {offsets = [64, 0], sizes = [8, 16], strides = [1, 1]} : vector<80x16xf32> to vector<8x16xf32>
    %cst_192 = arith.constant 0.949999988 : f32
    %342 = vector.broadcast %cst_192 : f32 to vector<8x16xf32>
    %343 = arith.mulf %342, %328 : vector<8x16xf32>
    %344 = arith.addf %343, %341 : vector<8x16xf32>
    %cst_193 = arith.constant 1.000000e+00 : f32
    %345 = vector.broadcast %cst_193 : f32 to vector<8x16xf32>
    %346 = arith.cmpf ogt, %328, %345 : vector<8x16xf32>
    %cst_194 = arith.constant 1.000000e+00 : f32
    %cst_195 = arith.constant 0.000000e+00 : f32
    %347 = vector.broadcast %cst_194 : f32 to vector<8x16xf32>
    %348 = vector.broadcast %cst_195 : f32 to vector<8x16xf32>
    %349 = arith.select %346, %347, %348 : vector<8x16xi1>, vector<8x16xf32>
    %350 = arith.subf %344, %349 : vector<8x16xf32>
    %cst_196 = arith.constant 1.000000e+00 : f32
    %351 = vector.broadcast %cst_196 : f32 to vector<8x16xf32>
    %352 = arith.cmpf ogt, %350, %351 : vector<8x16xf32>
    %cst_197 = arith.constant 1.000000e+00 : f32
    %cst_198 = arith.constant 0.000000e+00 : f32
    %353 = vector.broadcast %cst_197 : f32 to vector<8x16xf32>
    %354 = vector.broadcast %cst_198 : f32 to vector<8x16xf32>
    %355 = arith.select %352, %353, %354 : vector<8x16xi1>, vector<8x16xf32>
    %356 = arith.truncf %355 : vector<8x16xf32> to vector<8x16xbf16>
    %c8_199 = arith.constant 8 : index
    %c0_200 = arith.constant 0 : index
    %c0_201 = arith.constant 0 : index
    %357 = vector.load %arg6[%c8_199, %c0_200, %c0_201] : memref<10x8x16xbf16, #tpu.memory_space<vmem>>, vector<1x8x16xbf16>
    %358 = vector.shape_cast %357 : vector<1x8x16xbf16> to vector<8x16xbf16>
    %359 = vector.shape_cast %356 : vector<8x16xbf16> to vector<1x8x16xbf16>
    tpu.vector_store %arg6[%c8_199, %c0_200, %c0_201], %359 {strides = array<i32>} : memref<10x8x16xbf16, #tpu.memory_space<vmem>>, vector<1x8x16xbf16>,
    %c8_202 = arith.constant 8 : index
    %c0_203 = arith.constant 0 : index
    %c0_204 = arith.constant 0 : index
    %360 = vector.load %arg7[%c8_202, %c0_203, %c0_204] : memref<10x8x16xf32, #tpu.memory_space<vmem>>, vector<1x8x16xf32>
    %361 = vector.shape_cast %360 : vector<1x8x16xf32> to vector<8x16xf32>
    %362 = vector.shape_cast %350 : vector<8x16xf32> to vector<1x8x16xf32>
    tpu.vector_store %arg7[%c8_202, %c0_203, %c0_204], %362 {strides = array<i32>} : memref<10x8x16xf32, #tpu.memory_space<vmem>>, vector<1x8x16xf32>,
    %363 = vector.extract_strided_slice %163 {offsets = [72, 0], sizes = [8, 16], strides = [1, 1]} : vector<80x16xf32> to vector<8x16xf32>
    %cst_205 = arith.constant 0.949999988 : f32
    %364 = vector.broadcast %cst_205 : f32 to vector<8x16xf32>
    %365 = arith.mulf %364, %350 : vector<8x16xf32>
    %366 = arith.addf %365, %363 : vector<8x16xf32>
    %cst_206 = arith.constant 1.000000e+00 : f32
    %367 = vector.broadcast %cst_206 : f32 to vector<8x16xf32>
    %368 = arith.cmpf ogt, %350, %367 : vector<8x16xf32>
    %cst_207 = arith.constant 1.000000e+00 : f32
    %cst_208 = arith.constant 0.000000e+00 : f32
    %369 = vector.broadcast %cst_207 : f32 to vector<8x16xf32>
    %370 = vector.broadcast %cst_208 : f32 to vector<8x16xf32>
    %371 = arith.select %368, %369, %370 : vector<8x16xi1>, vector<8x16xf32>
    %372 = arith.subf %366, %371 : vector<8x16xf32>
    %cst_209 = arith.constant 1.000000e+00 : f32
    %373 = vector.broadcast %cst_209 : f32 to vector<8x16xf32>
    %374 = arith.cmpf ogt, %372, %373 : vector<8x16xf32>
    %cst_210 = arith.constant 1.000000e+00 : f32
    %cst_211 = arith.constant 0.000000e+00 : f32
    %375 = vector.broadcast %cst_210 : f32 to vector<8x16xf32>
    %376 = vector.broadcast %cst_211 : f32 to vector<8x16xf32>
    %377 = arith.select %374, %375, %376 : vector<8x16xi1>, vector<8x16xf32>
    %378 = arith.truncf %377 : vector<8x16xf32> to vector<8x16xbf16>
    %c9 = arith.constant 9 : index
    %c0_212 = arith.constant 0 : index
    %c0_213 = arith.constant 0 : index
    %379 = vector.load %arg6[%c9, %c0_212, %c0_213] : memref<10x8x16xbf16, #tpu.memory_space<vmem>>, vector<1x8x16xbf16>
    %380 = vector.shape_cast %379 : vector<1x8x16xbf16> to vector<8x16xbf16>
    %381 = vector.shape_cast %378 : vector<8x16xbf16> to vector<1x8x16xbf16>
    tpu.vector_store %arg6[%c9, %c0_212, %c0_213], %381 {strides = array<i32>} : memref<10x8x16xbf16, #tpu.memory_space<vmem>>, vector<1x8x16xbf16>,
    %c9_214 = arith.constant 9 : index
    %c0_215 = arith.constant 0 : index
    %c0_216 = arith.constant 0 : index
    %382 = vector.load %arg7[%c9_214, %c0_215, %c0_216] : memref<10x8x16xf32, #tpu.memory_space<vmem>>, vector<1x8x16xf32>
    %383 = vector.shape_cast %382 : vector<1x8x16xf32> to vector<8x16xf32>
    %384 = vector.shape_cast %372 : vector<8x16xf32> to vector<1x8x16xf32>
    tpu.vector_store %arg7[%c9_214, %c0_215, %c0_216], %384 {strides = array<i32>} : memref<10x8x16xf32, #tpu.memory_space<vmem>>, vector<1x8x16xf32>,
    return
  }
  func.func @transform_0(%arg0: i32) -> (i32, i32) {
    %c0_i32 = arith.constant 0 : i32
    %c0_i32_0 = arith.constant 0 : i32
    return %arg0, %c0_i32 : i32, i32
  }
  func.func @transform_1(%arg0: i32) -> (i32, i32) {
    %c0_i32 = arith.constant 0 : i32
    %c0_i32_0 = arith.constant 0 : i32
    %c0_i32_1 = arith.constant 0 : i32
    return %c0_i32, %c0_i32_0 : i32, i32
  }
  func.func @transform_2(%arg0: i32) -> (i32, i32) {
    %c0_i32 = arith.constant 0 : i32
    %c0_i32_0 = arith.constant 0 : i32
    %c0_i32_1 = arith.constant 0 : i32
    return %c0_i32, %c0_i32_0 : i32, i32
  }
  func.func @transform_3(%arg0: i32) -> (i32, i32) {
    %c0_i32 = arith.constant 0 : i32
    %c0_i32_0 = arith.constant 0 : i32
    %c0_i32_1 = arith.constant 0 : i32
    return %c0_i32, %c0_i32_0 : i32, i32
  }
  func.func @transform_4(%arg0: i32) -> (i32, i32) {
    %c0_i32 = arith.constant 0 : i32
    %c0_i32_0 = arith.constant 0 : i32
    %c0_i32_1 = arith.constant 0 : i32
    return %c0_i32, %c0_i32_0 : i32, i32
  }
  func.func @transform_5(%arg0: i32) -> (i32, i32, i32) {
    %c0_i32 = arith.constant 0 : i32
    %c0_i32_0 = arith.constant 0 : i32
    %c0_i32_1 = arith.constant 0 : i32
    return %c0_i32, %arg0, %c0_i32_0 : i32, i32, i32
  }
  func.func @transform_6(%arg0: i32) -> (i32, i32, i32) {
    %c0_i32 = arith.constant 0 : i32
    %c0_i32_0 = arith.constant 0 : i32
    %c0_i32_1 = arith.constant 0 : i32
    return %c0_i32, %arg0, %c0_i32_0 : i32, i32, i32
  }
}

</mosaic_0001>

<llo_original>
// kernel: tpu_custom_call.1
$region0: #{tpu_custom_call.1}
  #allocation0 [shape = 'u32[]', space=smem, size = 0x4, offset = 0x4, fixed_abs, tag = 'smem constant byte address 0x4 - core index']
  #allocation1 [shape = 'u32[144,128]{1,0:T(1,128)}', space=vmem, size = 0x12000, scoped, tag = 'internal scratch']
  #allocation2 [shape = 'f32[80,128]{1,0:T(8,128)}', space=vmem, size = 0xa000, scoped, tag = 'scratch operand']
  %s0 = inlined_call_operand.vmem [shape: bf16[8,128], index: 0, kind: input, shape index: {}]
  %s1 = inlined_call_operand.vmem [shape: bf16[128,128], index: 1, kind: input, shape index: {}]
  %s2 = inlined_call_operand.vmem [shape: f32[1,128], index: 2, kind: input, shape index: {}]
  %s3 = inlined_call_operand.vmem [shape: bf16[128,16], index: 3, kind: input, shape index: {}]
  %s4 = inlined_call_operand.vmem [shape: f32[1,16], index: 4, kind: input, shape index: {}]
  %s5 = inlined_call_operand.hbm [shape: bf16[10,8,16], index: 5, kind: output, shape index: {0}]
  %s6 = inlined_call_operand.hbm [shape: f32[10,8,16], index: 6, kind: output, shape index: {1}]
  %7 = xla_tuple %s5, %s6
  %s8 = sld [smem:[#allocation0]]
  $region38: #{tpu_custom_call.1} parent=0
    _
  %s10 = ssub.s32 1, %s8
  %s11 = scalar_select 0, %s10, %s8
  $region1: #{tpu_custom_call.1} parent=0
    #allocation3 [shape = 'u8[20480]{0}', space=vmem, size = 0x5000, scoped, tag = 'output window, operand 0, single buffered']
    #allocation4 [shape = 's32[1]{0}', space=sflag, size = 0x4, scoped, tag = 'scoped memory for tpu_custom_call.1']
    #allocation5 [shape = 'u8[40960]{0}', space=vmem, size = 0xa000, scoped, tag = 'output window, operand 1, single buffered']
    #allocation6 [shape = 's32[1]{0}', space=sflag, size = 0x4, scoped, tag = 'scoped memory for tpu_custom_call.1']
    %12 = vsyncpa [#allocation4], 0
    %13 = vsyncpa [#allocation6], 0
    // Predicated region
    $region2: #{tpu_custom_call.1} parent=1 // pred_check
      _
    $region3: #{tpu_custom_call.1} parent=1 // pred_check_branch
      %15 = sbr.rel (0) target = $region5
    $region4: #{tpu_custom_call.1} parent=1 // pred_region
      _
    $region5: #{tpu_custom_call.1} parent=1 // pred_fallthru
      _
    // Predicated region
    $region6: #{tpu_custom_call.1} parent=1 // pred_check
      _
    $region7: #{tpu_custom_call.1} parent=1 // pred_check_branch
      %17 = sbr.rel (0) target = $region9
    $region8: #{tpu_custom_call.1} parent=1 // pred_region
      _
    $region9: #{tpu_custom_call.1} parent=1 // pred_fallthru
      _
    // Predicated region
    $region10: #{tpu_custom_call.1} parent=1 // pred_check
      _
    $region11: #{tpu_custom_call.1} parent=1 // pred_check_branch
      %19 = sbr.rel (0) target = $region13
    $region12: #{tpu_custom_call.1} parent=1 // pred_region
      _
    $region13: #{tpu_custom_call.1} parent=1 // pred_fallthru
      _
    // Predicated region
    $region14: #{tpu_custom_call.1} parent=1 // pred_check
      _
    $region15: #{tpu_custom_call.1} parent=1 // pred_check_branch
      %21 = sbr.rel (0) target = $region17
    $region16: #{tpu_custom_call.1} parent=1 // pred_region
      _
    $region17: #{tpu_custom_call.1} parent=1 // pred_fallthru
      _
    // Predicated region
    $region18: #{tpu_custom_call.1} parent=1 // pred_check
      _
    $region19: #{tpu_custom_call.1} parent=1 // pred_check_branch
      %23 = sbr.rel (0) target = $region21
    $region20: #{tpu_custom_call.1} parent=1 // pred_region
      _
    $region21: #{tpu_custom_call.1} parent=1 // pred_fallthru
      _
    %v25 = vld [vmem:[%s0] sm:$0xf]
    %v26 = vld [vmem:[%s1] sm:$0xf]
    %v27 = vld [vmem:[%s1 + $0x4] sm:$0xf]
    %v28 = vld [vmem:[%s1 + $0x8] sm:$0xf]
    %v29 = vld [vmem:[%s1 + $0xc] sm:$0xf]
    %v30 = vld [vmem:[%s1 + $0x10] sm:$0xf]
    %v31 = vld [vmem:[%s1 + $0x14] sm:$0xf]
    %v32 = vld [vmem:[%s1 + $0x18] sm:$0xf]
    %v33 = vld [vmem:[%s1 + $0x1c] sm:$0xf]
    %v34 = vld [vmem:[%s1 + $0x20] sm:$0xf]
    %v35 = vld [vmem:[%s1 + $0x24] sm:$0xf]
    %v36 = vld [vmem:[%s1 + $0x28] sm:$0xf]
    %v37 = vld [vmem:[%s1 + $0x2c] sm:$0xf]
    %v38 = vld [vmem:[%s1 + $0x30] sm:$0xf]
    %v39 = vld [vmem:[%s1 + $0x34] sm:$0xf]
    %v40 = vld [vmem:[%s1 + $0x38] sm:$0xf]
    %v41 = vld [vmem:[%s1 + $0x3c] sm:$0xf]
    %v42 = vld [vmem:[%s2] sm:$0x1]
    %v44 = vlaneseq
    %v45 = vshrl.u32 %v44, 7
    %v46 = vsub.s32 0, %v45
    %v47 = vrot.slane %v42, %v46
    %v65 = vunpack.c.l.b16 %v26
    %v66 = vunpack.c.l.b16 %v27
    %v67 = vunpack.c.l.b16 %v28
    %v68 = vunpack.c.l.b16 %v29
    %v69 = vunpack.c.l.b16 %v30
    %v70 = vunpack.c.l.b16 %v31
    %v71 = vunpack.c.l.b16 %v32
    %v72 = vunpack.c.l.b16 %v33
    %v73 = vunpack.c.l.b16 %v34
    %v74 = vunpack.c.l.b16 %v35
    %v75 = vunpack.c.l.b16 %v36
    %v76 = vunpack.c.l.b16 %v37
    %v77 = vunpack.c.l.b16 %v38
    %v78 = vunpack.c.l.b16 %v39
    %v79 = vunpack.c.l.b16 %v40
    %v80 = vunpack.c.l.b16 %v41
    %v81 = vpack.c.b16 %v66, %v65
    %v82 = vpack.c.b16 %v68, %v67
    %v83 = vpack.c.b16 %v70, %v69
    %v84 = vpack.c.b16 %v72, %v71
    %v85 = vpack.c.b16 %v74, %v73
    %v86 = vpack.c.b16 %v76, %v75
    %v87 = vpack.c.b16 %v78, %v77
    %v88 = vpack.c.b16 %v80, %v79
    %97 = vmatprep.subr.bf16.mxu0 0
    %98 = vmatpush1.bf16.msra.mxu0 %v81
    %99 = vmatprep.subr.bf16.mxu0 0
    %100 = vmatpush1.bf16.msra.mxu0 %v82
    %101 = vmatprep.subr.bf16.mxu0 0
    %102 = vmatpush1.bf16.msra.mxu0 %v83
    %103 = vmatprep.subr.bf16.mxu0 0
    %104 = vmatpush1.bf16.msra.mxu0 %v84
    %105 = vmatprep.subr.bf16.mxu0 0
    %106 = vmatpush1.bf16.msra.mxu0 %v85
    %107 = vmatprep.subr.bf16.mxu0 0
    %108 = vmatpush1.bf16.msra.mxu0 %v86
    %109 = vmatprep.subr.bf16.mxu0 0
    %110 = vmatpush1.bf16.msra.mxu0 %v87
    %111 = vmatprep.subr.bf16.mxu0 0
    %112 = vmatpush1.bf16.msra.mxu0 %v88
    %113 = vmatprep.subr.bf16.mxu0 0
    %114 = vmatpush1.bf16.msra.mxu0 0
    %115 = vmatprep.subr.bf16.mxu0 0
    %116 = vmatpush1.bf16.msra.mxu0 0
    %117 = vmatprep.subr.bf16.mxu0 0
    %118 = vmatpush1.bf16.msra.mxu0 0
    %119 = vmatprep.subr.bf16.mxu0 0
    %120 = vmatpush1.bf16.msra.mxu0 0
    %121 = vmatprep.subr.bf16.mxu0 0
    %122 = vmatpush1.bf16.msra.mxu0 0
    %123 = vmatprep.subr.bf16.mxu0 0
    %124 = vmatpush1.bf16.msra.mxu0 0
    %125 = vmatprep.subr.bf16.mxu0 0
    %126 = vmatpush1.bf16.msra.mxu0 0
    %127 = vmatprep.subr.bf16.mxu0 0
    %128 = vmatpush1.bf16.msra.mxu0 0
    %129 = vmatprep.mubr.bf16.mxu0 0
    %130 = vmatmul.mubr.bf16.gmra.mrb[0].mxu0 %v25
    %v131 = vpop.f32.mrb[0].mxu0
    %v132 = vadd.f32 %v47, %v131
    %v133 = vpop.f32.mrb[0].mxu0
    %v134 = vpop.f32.mrb[0].mxu0
    %v135 = vpop.f32.mrb[0].mxu0
    %136 = vdwg.mxu0
    %v137 = vadd.f32 %v132, 0.0
    %vm138 = vcmp.gt.f32.partialorder 0.0, 1.0
    %v139 = vsel %vm138, 1.0, 0.0
    %v140 = vsub.f32 %v137, %v139
    %vm141 = vcmp.gt.f32.partialorder %v140, 1.0
    %v142 = vsel %vm141, 1.0, 0.0
    %143 = vst [vmem:[#allocation2] sm:$0xff] %v142
    %v144 = vmul.f32 %v140, 0.95
    %v145 = vadd.f32 %v144, %v132
    %v146 = vsub.f32 %v145, %v142
    %vm147 = vcmp.gt.f32.partialorder %v146, 1.0
    %v148 = vsel %vm147, 1.0, 0.0
    %149 = vst [vmem:[#allocation2 + $0x8] sm:$0xff] %v148
    %v150 = vmul.f32 %v146, 0.95
    %v151 = vadd.f32 %v150, %v132
    %v152 = vsub.f32 %v151, %v148
    %vm153 = vcmp.gt.f32.partialorder %v152, 1.0
    %v154 = vsel %vm153, 1.0, 0.0
    %155 = vst [vmem:[#allocation2 + $0x10] sm:$0xff] %v154
    %v156 = vmul.f32 %v152, 0.95
    %v157 = vadd.f32 %v156, %v132
    %v158 = vsub.f32 %v157, %v154
    %vm159 = vcmp.gt.f32.partialorder %v158, 1.0
    %v160 = vsel %vm159, 1.0, 0.0
    %161 = vst [vmem:[#allocation2 + $0x18] sm:$0xff] %v160
    %v162 = vmul.f32 %v158, 0.95
    %v163 = vadd.f32 %v162, %v132
    %v164 = vsub.f32 %v163, %v160
    %vm165 = vcmp.gt.f32.partialorder %v164, 1.0
    %v166 = vsel %vm165, 1.0, 0.0
    %167 = vst [vmem:[#allocation2 + $0x20] sm:$0xff] %v166
    %v168 = vmul.f32 %v164, 0.95
    %v169 = vadd.f32 %v168, %v132
    %v170 = vsub.f32 %v169, %v166
    %vm171 = vcmp.gt.f32.partialorder %v170, 1.0
    %v172 = vsel %vm171, 1.0, 0.0
    %173 = vst [vmem:[#allocation2 + $0x28] sm:$0xff] %v172
    %v174 = vmul.f32 %v170, 0.95
    %v175 = vadd.f32 %v174, %v132
    %v176 = vsub.f32 %v175, %v172
    %vm177 = vcmp.gt.f32.partialorder %v176, 1.0
    %v178 = vsel %vm177, 1.0, 0.0
    %179 = vst [vmem:[#allocation2 + $0x30] sm:$0xff] %v178
    %v180 = vmul.f32 %v176, 0.95
    %v181 = vadd.f32 %v180, %v132
    %v182 = vsub.f32 %v181, %v178
    %vm183 = vcmp.gt.f32.partialorder %v182, 1.0
    %v184 = vsel %vm183, 1.0, 0.0
    %185 = vst [vmem:[#allocation2 + $0x38] sm:$0xff] %v184
    %v186 = vmul.f32 %v182, 0.95
    %v187 = vadd.f32 %v186, %v132
    %v188 = vsub.f32 %v187, %v184
    %vm189 = vcmp.gt.f32.partialorder %v188, 1.0
    %v190 = vsel %vm189, 1.0, 0.0
    %191 = vst [vmem:[#allocation2 + $0x40] sm:$0xff] %v190
    %v192 = vmul.f32 %v188, 0.95
    %v193 = vadd.f32 %v192, %v132
    %v194 = vsub.f32 %v193, %v190
    %vm195 = vcmp.gt.f32.partialorder %v194, 1.0
    %v196 = vsel %vm195, 1.0, 0.0
    %197 = vst [vmem:[#allocation2 + $0x48] sm:$0xff] %v196
    %v198 = vld [vmem:[#allocation2] sm:$0xff]
    %v199 = vld [vmem:[#allocation2 + $0x8] sm:$0xff]
    %v200 = vld [vmem:[#allocation2 + $0x10] sm:$0xff]
    %v201 = vld [vmem:[#allocation2 + $0x18] sm:$0xff]
    %v202 = vld [vmem:[#allocation2 + $0x20] sm:$0xff]
    %v203 = vld [vmem:[#allocation2 + $0x28] sm:$0xff]
    %v204 = vld [vmem:[#allocation2 + $0x30] sm:$0xff]
    %v205 = vld [vmem:[#allocation2 + $0x38] sm:$0xff]
    %v206 = vld [vmem:[#allocation2 + $0x40] sm:$0xff]
    %v207 = vld [vmem:[#allocation2 + $0x48] sm:$0xff]
    %v208 = vpack.c.bf16 %v199, %v198
    %v209 = vpack.c.bf16 %v201, %v200
    %v210 = vpack.c.bf16 %v203, %v202
    %v211 = vpack.c.bf16 %v205, %v204
    %v212 = vpack.c.bf16 %v207, %v206
    %v213 = vld [vmem:[%s3] sm:$0xf]
    %v214 = vld [vmem:[%s3 + $0x4] sm:$0xf]
    %v215 = vld [vmem:[%s3 + $0x8] sm:$0xf]
    %v216 = vld [vmem:[%s3 + $0xc] sm:$0xf]
    %v217 = vld [vmem:[%s3 + $0x10] sm:$0xf]
    %v218 = vld [vmem:[%s3 + $0x14] sm:$0xf]
    %v219 = vld [vmem:[%s3 + $0x18] sm:$0xf]
    %v220 = vld [vmem:[%s3 + $0x1c] sm:$0xf]
    %v221 = vld [vmem:[%s3 + $0x20] sm:$0xf]
    %v222 = vld [vmem:[%s3 + $0x24] sm:$0xf]
    %v223 = vld [vmem:[%s3 + $0x28] sm:$0xf]
    %v224 = vld [vmem:[%s3 + $0x2c] sm:$0xf]
    %v225 = vld [vmem:[%s3 + $0x30] sm:$0xf]
    %v226 = vld [vmem:[%s3 + $0x34] sm:$0xf]
    %v227 = vld [vmem:[%s3 + $0x38] sm:$0xf]
    %v228 = vld [vmem:[%s3 + $0x3c] sm:$0xf]
    %v229 = vld [vmem:[%s4] sm:$0x1]
    %v231 = vlaneseq
    %v232 = vshrl.u32 %v231, 7
    %v233 = vsub.s32 0, %v232
    %v234 = vrot.slane %v229, %v233
    %v252 = vunpack.c.l.b16 %v213
    %v253 = vunpack.c.l.b16 %v214
    %v254 = vunpack.c.l.b16 %v215
    %v255 = vunpack.c.l.b16 %v216
    %v256 = vunpack.c.l.b16 %v217
    %v257 = vunpack.c.l.b16 %v218
    %v258 = vunpack.c.l.b16 %v219
    %v259 = vunpack.c.l.b16 %v220
    %v260 = vunpack.c.l.b16 %v221
    %v261 = vunpack.c.l.b16 %v222
    %v262 = vunpack.c.l.b16 %v223
    %v263 = vunpack.c.l.b16 %v224
    %v264 = vunpack.c.l.b16 %v225
    %v265 = vunpack.c.l.b16 %v226
    %v266 = vunpack.c.l.b16 %v227
    %v267 = vunpack.c.l.b16 %v228
    %v268 = vpack.c.b16 %v253, %v252
    %v269 = vpack.c.b16 %v255, %v254
    %v270 = vpack.c.b16 %v257, %v256
    %v271 = vpack.c.b16 %v259, %v258
    %v272 = vpack.c.b16 %v261, %v260
    %v273 = vpack.c.b16 %v263, %v262
    %v274 = vpack.c.b16 %v265, %v264
    %v275 = vpack.c.b16 %v267, %v266
    %284 = vmatprep.subr.bf16.mxu0 0
    %285 = vmatpush1.bf16.msra.mxu0 %v268
    %286 = vmatprep.subr.bf16.mxu0 0
    %287 = vmatpush1.bf16.msra.mxu0 %v269
    %288 = vmatprep.subr.bf16.mxu0 0
    %289 = vmatpush1.bf16.msra.mxu0 %v270
    %290 = vmatprep.subr.bf16.mxu0 0
    %291 = vmatpush1.bf16.msra.mxu0 %v271
    %292 = vmatprep.subr.bf16.mxu0 0
    %293 = vmatpush1.bf16.msra.mxu0 %v272
    %294 = vmatprep.subr.bf16.mxu0 0
    %295 = vmatpush1.bf16.msra.mxu0 %v273
    %296 = vmatprep.subr.bf16.mxu0 0
    %297 = vmatpush1.bf16.msra.mxu0 %v274
    %298 = vmatprep.subr.bf16.mxu0 0
    %299 = vmatpush1.bf16.msra.mxu0 %v275
    %300 = vmatprep.subr.bf16.mxu0 0
    %301 = vmatpush1.bf16.msra.mxu0 0
    %302 = vmatprep.subr.bf16.mxu0 0
    %303 = vmatpush1.bf16.msra.mxu0 0
    %304 = vmatprep.subr.bf16.mxu0 0
    %305 = vmatpush1.bf16.msra.mxu0 0
    %306 = vmatprep.subr.bf16.mxu0 0
    %307 = vmatpush1.bf16.msra.mxu0 0
    %308 = vmatprep.subr.bf16.mxu0 0
    %309 = vmatpush1.bf16.msra.mxu0 0
    %310 = vmatprep.subr.bf16.mxu0 0
    %311 = vmatpush1.bf16.msra.mxu0 0
    %312 = vmatprep.subr.bf16.mxu0 0
    %313 = vmatpush1.bf16.msra.mxu0 0
    %314 = vmatprep.subr.bf16.mxu0 0
    %315 = vmatpush1.bf16.msra.mxu0 0
    %316 = vmatprep.mubr.bf16.mxu0 0
    %317 = vmatmul.mubr.bf16.gmra.mrb[0].mxu0 %v208
    %v318 = vpop.f32.mrb[0].mxu0
    %v319 = vadd.f32 %v234, %v318
    %v320 = vpop.f32.mrb[0].mxu0
    %v321 = vpop.f32.mrb[0].mxu0
    %v322 = vadd.f32 %v234, %v321
    %v323 = vpop.f32.mrb[0].mxu0
    %324 = vmatprep.mubr.bf16.mxu0 0
    %325 = vmatmul.mubr.bf16.gmra.mrb[0].mxu0 %v209
    %v326 = vpop.f32.mrb[0].mxu0
    %v327 = vadd.f32 %v234, %v326
    %v328 = vpop.f32.mrb[0].mxu0
    %v329 = vpop.f32.mrb[0].mxu0
    %v330 = vadd.f32 %v234, %v329
    %v331 = vpop.f32.mrb[0].mxu0
    %332 = vmatprep.mubr.bf16.mxu0 0
    %333 = vmatmul.mubr.bf16.gmra.mrb[0].mxu0 %v210
    %v334 = vpop.f32.mrb[0].mxu0
    %v335 = vadd.f32 %v234, %v334
    %v336 = vpop.f32.mrb[0].mxu0
    %v337 = vpop.f32.mrb[0].mxu0
    %v338 = vadd.f32 %v234, %v337
    %v339 = vpop.f32.mrb[0].mxu0
    %340 = vmatprep.mubr.bf16.mxu0 0
    %341 = vmatmul.mubr.bf16.gmra.mrb[0].mxu0 %v211
    %v342 = vpop.f32.mrb[0].mxu0
    %v343 = vadd.f32 %v234, %v342
    %v344 = vpop.f32.mrb[0].mxu0
    %v345 = vpop.f32.mrb[0].mxu0
    %v346 = vadd.f32 %v234, %v345
    %v347 = vpop.f32.mrb[0].mxu0
    %348 = vmatprep.mubr.bf16.mxu0 0
    %349 = vmatmul.mubr.bf16.gmra.mrb[0].mxu0 %v212
    %v350 = vpop.f32.mrb[0].mxu0
    %v351 = vadd.f32 %v234, %v350
    %v352 = vpop.f32.mrb[0].mxu0
    %v353 = vpop.f32.mrb[0].mxu0
    %v354 = vadd.f32 %v234, %v353
    %v355 = vpop.f32.mrb[0].mxu0
    %356 = vdwg.mxu0
    %v357 = vadd.f32 %v319, 0.0
    %v358 = vsub.f32 %v357, %v139
    %vm359 = vcmp.gt.f32.partialorder %v358, 1.0
    %v360 = vsel %vm359, 1.0, 0.0
    %v361 = vpack.c.bf16 %v360, %v360
    %vm362 = vcmask 125952
    %363 = vst.msk [vmem:[#allocation3] sm:$0xf] %vm362, %v361
    %vm364 = vcmask 130048
    %365 = vst.msk [vmem:[#allocation5] sm:$0xff] %vm364, %v358
    %v366 = vmul.f32 %v358, 0.95
    %v367 = vadd.f32 %v366, %v322
    %v368 = vsub.f32 %v367, %v360
    %vm369 = vcmp.gt.f32.partialorder %v368, 1.0
    %v370 = vsel %vm369, 1.0, 0.0
    %v371 = vpack.c.bf16 %v370, %v370
    %s372 = scalar_lea.vmem [#allocation3], 4
    %373 = vst.msk [vmem:[%s372] sm:$0xf] %vm362, %v371
    %s374 = scalar_lea.vmem [#allocation5], 8
    %375 = vst.msk [vmem:[%s374] sm:$0xff] %vm364, %v368
    %v376 = vmul.f32 %v368, 0.95
    %v377 = vadd.f32 %v376, %v327
    %v378 = vsub.f32 %v377, %v370
    %vm379 = vcmp.gt.f32.partialorder %v378, 1.0
    %v380 = vsel %vm379, 1.0, 0.0
    %v381 = vpack.c.bf16 %v380, %v380
    %s382 = scalar_lea.vmem [#allocation3], 8
    %383 = vst.msk [vmem:[%s382] sm:$0xf] %vm362, %v381
    %s384 = scalar_lea.vmem [#allocation5], 16
    %385 = vst.msk [vmem:[%s384] sm:$0xff] %vm364, %v378
    %v386 = vmul.f32 %v378, 0.95
    %v387 = vadd.f32 %v386, %v330
    %v388 = vsub.f32 %v387, %v380
    %vm389 = vcmp.gt.f32.partialorder %v388, 1.0
    %v390 = vsel %vm389, 1.0, 0.0
    %v391 = vpack.c.bf16 %v390, %v390
    %s392 = scalar_lea.vmem [#allocation3], 12
    %393 = vst.msk [vmem:[%s392] sm:$0xf] %vm362, %v391
    %s394 = scalar_lea.vmem [#allocation5], 24
    %395 = vst.msk [vmem:[%s394] sm:$0xff] %vm364, %v388
    %v396 = vmul.f32 %v388, 0.95
    %v397 = vadd.f32 %v396, %v335
    %v398 = vsub.f32 %v397, %v390
    %vm399 = vcmp.gt.f32.partialorder %v398, 1.0
    %v400 = vsel %vm399, 1.0, 0.0
    %v401 = vpack.c.bf16 %v400, %v400
    %s402 = scalar_lea.vmem [#allocation3], 16
    %403 = vst.msk [vmem:[%s402] sm:$0xf] %vm362, %v401
    %s404 = scalar_lea.vmem [#allocation5], 32
    %405 = vst.msk [vmem:[%s404] sm:$0xff] %vm364, %v398
    %v406 = vmul.f32 %v398, 0.95
    %v407 = vadd.f32 %v406, %v338
    %v408 = vsub.f32 %v407, %v400
    %vm409 = vcmp.gt.f32.partialorder %v408, 1.0
    %v410 = vsel %vm409, 1.0, 0.0
    %v411 = vpack.c.bf16 %v410, %v410
    %s412 = scalar_lea.vmem [#allocation3], 20
    %413 = vst.msk [vmem:[%s412] sm:$0xf] %vm362, %v411
    %s414 = scalar_lea.vmem [#allocation5], 40
    %415 = vst.msk [vmem:[%s414] sm:$0xff] %vm364, %v408
    %v416 = vmul.f32 %v408, 0.95
    %v417 = vadd.f32 %v416, %v343
    %v418 = vsub.f32 %v417, %v410
    %vm419 = vcmp.gt.f32.partialorder %v418, 1.0
    %v420 = vsel %vm419, 1.0, 0.0
    %v421 = vpack.c.bf16 %v420, %v420
    %s422 = scalar_lea.vmem [#allocation3], 24
    %423 = vst.msk [vmem:[%s422] sm:$0xf] %vm362, %v421
    %s424 = scalar_lea.vmem [#allocation5], 48
    %425 = vst.msk [vmem:[%s424] sm:$0xff] %vm364, %v418
    %v426 = vmul.f32 %v418, 0.95
    %v427 = vadd.f32 %v426, %v346
    %v428 = vsub.f32 %v427, %v420
    %vm429 = vcmp.gt.f32.partialorder %v428, 1.0
    %v430 = vsel %vm429, 1.0, 0.0
    %v431 = vpack.c.bf16 %v430, %v430
    %s432 = scalar_lea.vmem [#allocation3], 28
    %433 = vst.msk [vmem:[%s432] sm:$0xf] %vm362, %v431
    %s434 = scalar_lea.vmem [#allocation5], 56
    %435 = vst.msk [vmem:[%s434] sm:$0xff] %vm364, %v428
    %v436 = vmul.f32 %v428, 0.95
    %v437 = vadd.f32 %v436, %v351
    %v438 = vsub.f32 %v437, %v430
    %vm439 = vcmp.gt.f32.partialorder %v438, 1.0
    %v440 = vsel %vm439, 1.0, 0.0
    %v441 = vpack.c.bf16 %v440, %v440
    %s442 = scalar_lea.vmem [#allocation3], 32
    %443 = vst.msk [vmem:[%s442] sm:$0xf] %vm362, %v441
    %s444 = scalar_lea.vmem [#allocation5], 64
    %445 = vst.msk [vmem:[%s444] sm:$0xff] %vm364, %v438
    %v446 = vmul.f32 %v438, 0.95
    %v447 = vadd.f32 %v446, %v354
    %v448 = vsub.f32 %v447, %v440
    %vm449 = vcmp.gt.f32.partialorder %v448, 1.0
    %v450 = vsel %vm449, 1.0, 0.0
    %v451 = vpack.c.bf16 %v450, %v450
    %s452 = scalar_lea.vmem [#allocation3], 36
    %453 = vst.msk [vmem:[%s452] sm:$0xf] %vm362, %v451
    %s454 = scalar_lea.vmem [#allocation5], 72
    %455 = vst.msk [vmem:[%s454] sm:$0xff] %vm364, %v448
    // Predicated region
    $region22: #{tpu_custom_call.1} parent=1 // pred_check
      _
    $region23: #{tpu_custom_call.1} parent=1 // pred_check_branch
      %457 = sbr.rel (0) target = $region25
    $region24: #{tpu_custom_call.1} parent=1 // pred_region
      %s459 = ssub.s32 640, 640
      %460 = vsyncadd [#allocation4], %s459
      %s461 = sshll.u32 [#allocation3], 4
      %s462 = int_to_ptr.vmem [resolvable:$true] %s461
      %467 = dma.vmem_to_hbm [thread:$0]  %s462, 640, %s5, [#allocation4], 64, 64, 4
    $region25: #{tpu_custom_call.1} parent=1 // pred_fallthru
      _
    // Predicated region
    $region26: #{tpu_custom_call.1} parent=1 // pred_check
      _
    $region27: #{tpu_custom_call.1} parent=1 // pred_check_branch
      %469 = sbr.rel (0) target = $region29
    $region28: #{tpu_custom_call.1} parent=1 // pred_region
      %s471 = ssub.s32 1280, 1280
      %472 = vsyncadd [#allocation6], %s471
      %s473 = sshll.u32 [#allocation5], 4
      %s474 = int_to_ptr.vmem [resolvable:$true] %s473
      %479 = dma.vmem_to_hbm [thread:$0]  %s474, 1280, %s6, [#allocation6], 128, 128, 8
    $region29: #{tpu_custom_call.1} parent=1 // pred_fallthru
      _
    // Predicated region
    $region30: #{tpu_custom_call.1} parent=1 // pred_check
      _
    $region31: #{tpu_custom_call.1} parent=1 // pred_check_branch
      %481 = sbr.rel (0) target = $region33
    $region32: #{tpu_custom_call.1} parent=1 // pred_region
      %482 = dma.done [#allocation4], 640
    $region33: #{tpu_custom_call.1} parent=1 // pred_fallthru
      _
    // Predicated region
    $region34: #{tpu_custom_call.1} parent=1 // pred_check
      _
    $region35: #{tpu_custom_call.1} parent=1 // pred_check_branch
      %484 = sbr.rel (0) target = $region37
    $region36: #{tpu_custom_call.1} parent=1 // pred_region
      %485 = dma.done [#allocation6], 1280
    $region37: #{tpu_custom_call.1} parent=1 // pred_fallthru
      _
    %486 = vsyncpa [#allocation4], 1
    %487 = vsyncpa [#allocation6], 1

</llo_original>
